<compile_context>
chip_gen: v7x
topology: tpu7x:2x2x1
jax: 0.10.0
libtpu: 0.0.40
codegen_flags: <defaults>
</compile_context>

<pallas_src>
import jax
import jax.numpy as jnp
from jax.experimental import pallas as pl
from jax.experimental.pallas import tpu as pltpu


# ----------------------------------------------------------------------------
# Kernel
# ----------------------------------------------------------------------------
def grouped_linear_kernel(x_ref, w_ref, b_ref, o_ref, acc_ref):
    # x_ref: (G, B, tk)  in the input dtype (cast to bf16 below, in-vreg)
    # w_ref: (G, tn, tk) bf16, torch layout (contract both last dims)
    # b_ref: (G, 1, tn)  f32
    # o_ref: (G, B, tn)  output dtype
    # acc_ref: (G, B, tn) f32 VMEM accumulator, resident across the K axis.
    k = pl.program_id(2)

    @pl.when(k == 0)
    def _init():
        acc_ref[...] = jnp.zeros_like(acc_ref)

    x = x_ref[...].astype(w_ref.dtype)          # in-kernel cast, no HBM pass
    acc_ref[...] += jax.lax.dot_general(
        x, w_ref[...],
        dimension_numbers=(((2,), (2,)), ((0,), (0,))),   # batched, "trans_b"
        preferred_element_type=jnp.float32,
    )

    @pl.when(k == pl.num_programs(2) - 1)
    def _finalize():
        o_ref[...] = (acc_ref[...] + b_ref[...]).astype(o_ref.dtype)


# ----------------------------------------------------------------------------
# Parameter preparation (one-time, at module/param init -- NOT per forward)
# ----------------------------------------------------------------------------
def prepare_params(weights, biases, compute_dtype=jnp.bfloat16):
    """weights: (N, D_out, D_in) torch Linear layout; biases: (N, D_out).
    Casts weights to the streaming dtype once and reshapes biases; no
    transpose is materialized (the kernel contracts the torch layout)."""
    w_c = weights.astype(compute_dtype)                  # (N, D_out, D_in)
    b_c = biases[:, None, :].astype(jnp.float32)         # (N, 1, D_out)
    return w_c, b_c


# ----------------------------------------------------------------------------
# Tiling helpers
# ----------------------------------------------------------------------------
def _largest_aligned_divisor(dim, target, align=128):
    """Largest tile <= target that is a multiple of `align` and divides `dim`.
    Falls back to the full dim (always a legal block shape)."""
    if dim <= target or dim % align != 0:
        return dim
    t = (min(target, dim) // align) * align
    while t >= align:
        if dim % t == 0:
            return t
        t -= align
    return dim


def _vmem_budget_bytes():
    """~80% of the queried per-core VMEM capacity; conservative fallback."""
    cap = 64 * 1024 * 1024
    try:
        info = pltpu.get_tpu_info()
        cap = int(getattr(info, "vmem_capacity_bytes", cap))
    except Exception:
        pass
    return int(0.8 * cap)


# ----------------------------------------------------------------------------
# Forward
# ----------------------------------------------------------------------------
def mmodel_forward(x, w_c, b_c, *, out_dtype=None, tk_target=512,
                   tn_target=512, group_block=None):
    """x: (N, B, D_in); w_c: (N, D_out, D_in) bf16 (from prepare_params);
    b_c: (N, 1, D_out) f32.  Returns (N, B, D_out) in out_dtype (default
    x.dtype)."""
    N, B, D_in = x.shape
    _, D_out, D_in_w = w_c.shape
    assert D_in_w == D_in, "weight/input feature-dim mismatch"
    out_dtype = x.dtype if out_dtype is None else out_dtype

    # K / D_out tiles: multiples of 128 (lane-dense) or the full dim.
    tk = _largest_aligned_divisor(D_in, tk_target)
    tn = _largest_aligned_divisor(D_out, tn_target)

    isz = lambda dt: jnp.dtype(dt).itemsize
    # Per-group per-step VMEM bytes: double-buffered I/O blocks + f32 acc.
    per_group = (2 * (B * tk * isz(x.dtype)
                      + tn * tk * isz(w_c.dtype)
                      + tn * isz(b_c.dtype)
                      + B * tn * isz(out_dtype))
                 + B * tn * 4)
    headroom = 2 << 20
    budget = _vmem_budget_bytes()

    if per_group + headroom > budget:
        raise ValueError(
            f"Per-group working set {per_group} B (+{headroom} B headroom) "
            f"exceeds VMEM budget {budget} B even at G=1; reduce "
            f"tk_target/tn_target.")

    if group_block is None:
        g_vmem = max(1, (budget - headroom) // per_group)
        # Keep >= ~4 group steps so each v7x TensorCore has steps to overlap.
        g_steps = pl.cdiv(N, 4) if N >= 4 else N
        G = max(1, min(N, g_vmem, g_steps))
    else:
        G = max(1, min(group_block, N))

    grid = (pl.cdiv(N, G), pl.cdiv(D_out, tn), pl.cdiv(D_in, tk))

    cost = pl.CostEstimate(
        flops=2 * N * B * D_in * D_out,
        transcendentals=0,
        bytes_accessed=(x.size * isz(x.dtype) * (D_out // tn)   # x re-read per D_out tile
                        + w_c.size * isz(w_c.dtype)
                        + b_c.size * isz(b_c.dtype)
                        + N * B * D_out * isz(out_dtype)),
    )

    return pl.pallas_call(
        grouped_linear_kernel,
        out_shape=jax.ShapeDtypeStruct((N, B, D_out), out_dtype),
        grid_spec=pltpu.PrefetchScalarGridSpec(
            num_scalar_prefetch=0,
            grid=grid,
            in_specs=[
                pl.BlockSpec((G, B, tk), lambda g, j, k: (g, 0, k)),
                pl.BlockSpec((G, tn, tk), lambda g, j, k: (g, j, k)),
                pl.BlockSpec((G, 1, tn), lambda g, j, k: (g, 0, j)),
            ],
            out_specs=pl.BlockSpec((G, B, tn), lambda g, j, k: (g, 0, j)),
            scratch_shapes=[pltpu.VMEM((G, B, tn), jnp.float32)],
        ),
        compiler_params=pltpu.CompilerParams(
            dimension_semantics=("parallel", "parallel", "arbitrary"),
            vmem_limit_bytes=budget,
        ),
        cost_estimate=cost,
    )(x, w_c, b_c)


# ----------------------------------------------------------------------------
# Example / self-test
# ----------------------------------------------------------------------------
if __name__ == "__main__":
    # N per-module Linears applied to x[i].  Small shapes; D_in/D_out = 256 and
    # 128-wide tile targets below so the D_out/K grid axes + accumulator path
    # is actually exercised (grid = (4, 2, 2)).
    N, B, D_in, D_out = 8, 16, 256, 256

    key = jax.random.PRNGKey(0)
    kx, kw, kb = jax.random.split(key, 3)

    x = jax.random.normal(kx, (N, B, D_in), dtype=jnp.float32)
    # Deterministic per-module Linear params (synthetic, torch layout).
    weights = jax.random.normal(kw, (N, D_out, D_in), dtype=jnp.float32) * 0.1
    biases = jax.random.normal(kb, (N, D_out), dtype=jnp.float32) * 0.1

    # One-time param prep (bf16 cast of weights) -- outside the forward pass.
    w_c, b_c = prepare_params(weights, biases)

    out = jax.block_until_ready(
        mmodel_forward(x, w_c, b_c, tk_target=128, tn_target=128))
    assert out.shape == (N, B, D_out)

    # Reference on the same bf16-rounded weights, f32 math (matches kernel
    # numerics up to accumulation order).
    xr = x.astype(jnp.bfloat16).astype(jnp.float32)
    wr = weights.astype(jnp.bfloat16).astype(jnp.float32)
    ref = jnp.einsum("nbd,nod->nbo", xr, wr) + biases[:, None, :]
    assert jnp.allclose(out, ref, atol=2e-3, rtol=2e-3)

    # Sanity vs full-f32 math (bf16 streaming rounding only).
    ref_f32 = jnp.einsum("nbd,nod->nbo", x, weights) + biases[:, None, :]
    assert jnp.allclose(out, ref_f32, atol=8e-2, rtol=8e-2)

    print("KERNEL_OK")
</pallas_src>

<mosaic_0001>
module attributes {stable_mosaic.version = 11 : i64} {
  func.func @grouped_linear_kernel(%arg0: i32, %arg1: i32, %arg2: i32, %arg3: memref<2x16x128xf32, #tpu.memory_space<vmem>>, %arg4: memref<2x128x128xbf16, #tpu.memory_space<vmem>>, %arg5: memref<2x1x128xf32, #tpu.memory_space<vmem>>, %arg6: memref<2x16x128xf32, #tpu.memory_space<vmem>>, %arg7: memref<2x16x128xf32, #tpu.memory_space<vmem>>) attributes {dimension_semantics = [#tpu.dimension_semantics<parallel>, #tpu.dimension_semantics<parallel>, #tpu.dimension_semantics<arbitrary>], iteration_bounds = array<i64: 4, 2, 2>, scalar_prefetch = 0 : i64, scratch_operands = 1 : i64, tpu.core_type = #tpu.core_type<tc>, window_params = [{transform_indices = @transform_0, window_bounds = array<i64: 2, 16, 128>}, {transform_indices = @transform_1, window_bounds = array<i64: 2, 128, 128>}, {transform_indices = @transform_2, window_bounds = array<i64: 2, 1, 128>}, {transform_indices = @transform_3, window_bounds = array<i64: 2, 16, 128>}]} {
    %c0_i32 = arith.constant 0 : i32
    %0 = arith.cmpi eq, %arg2, %c0_i32 : i32
    %1 = arith.extui %0 : i1 to i32
    %c0_i32_0 = arith.constant 0 : i32
    %2 = arith.cmpi ne, %1, %c0_i32_0 : i32
    scf.if %2 {
      %cst_13 = arith.constant 0.000000e+00 : f32
      %13 = vector.broadcast %cst_13 : f32 to vector<2x16x128xf32>
      %c0_14 = arith.constant 0 : index
      %c0_15 = arith.constant 0 : index
      %c0_16 = arith.constant 0 : index
      %14 = vector.load %arg7[%c0_14, %c0_15, %c0_16] : memref<2x16x128xf32, #tpu.memory_space<vmem>>, vector<2x16x128xf32>
      tpu.vector_store %arg7[%c0_14, %c0_15, %c0_16], %13 {strides = array<i32>} : memref<2x16x128xf32, #tpu.memory_space<vmem>>, vector<2x16x128xf32>,
    } else {
    }
    %c0 = arith.constant 0 : index
    %c0_1 = arith.constant 0 : index
    %c0_2 = arith.constant 0 : index
    %3 = vector.load %arg3[%c0, %c0_1, %c0_2] : memref<2x16x128xf32, #tpu.memory_space<vmem>>, vector<2x16x128xf32>
    %4 = arith.truncf %3 : vector<2x16x128xf32> to vector<2x16x128xbf16>
    %c0_3 = arith.constant 0 : index
    %c0_4 = arith.constant 0 : index
    %c0_5 = arith.constant 0 : index
    %5 = vector.load %arg7[%c0_3, %c0_4, %c0_5] : memref<2x16x128xf32, #tpu.memory_space<vmem>>, vector<2x16x128xf32>
    %c0_6 = arith.constant 0 : index
    %c0_7 = arith.constant 0 : index
    %c0_8 = arith.constant 0 : index
    %6 = vector.load %arg4[%c0_6, %c0_7, %c0_8] : memref<2x128x128xbf16, #tpu.memory_space<vmem>>, vector<2x128x128xbf16>
    %cst = arith.constant dense<0.000000e+00> : vector<2x16x128xf32>
    %7 = tpu.matmul %4, %6, %cst {dimension_numbers = #tpu.dot_dimension_numbers<[2], [2], [1], [1], [0, 0, 0, 1, 1, 1], [0], [0]>} : vector<2x16x128xbf16>, vector<2x128x128xbf16>, vector<2x16x128xf32> -> vector<2x16x128xf32>
    %8 = arith.addf %5, %7 : vector<2x16x128xf32>
    %c0_9 = arith.constant 0 : index
    %c0_10 = arith.constant 0 : index
    %c0_11 = arith.constant 0 : index
    %9 = vector.load %arg7[%c0_9, %c0_10, %c0_11] : memref<2x16x128xf32, #tpu.memory_space<vmem>>, vector<2x16x128xf32>
    tpu.vector_store %arg7[%c0_9, %c0_10, %c0_11], %8 {strides = array<i32>} : memref<2x16x128xf32, #tpu.memory_space<vmem>>, vector<2x16x128xf32>,
    %c1_i32 = arith.constant 1 : i32
    %10 = arith.cmpi eq, %arg2, %c1_i32 : i32
    %11 = arith.extui %10 : i1 to i32
    %c0_i32_12 = arith.constant 0 : i32
    %12 = arith.cmpi ne, %11, %c0_i32_12 : i32
    scf.if %12 {
      %c0_13 = arith.constant 0 : index
      %c0_14 = arith.constant 0 : index
      %c0_15 = arith.constant 0 : index
      %13 = vector.load %arg7[%c0_13, %c0_14, %c0_15] : memref<2x16x128xf32, #tpu.memory_space<vmem>>, vector<2x16x128xf32>
      %c0_16 = arith.constant 0 : index
      %c0_17 = arith.constant 0 : index
      %c0_18 = arith.constant 0 : index
      %14 = vector.load %arg5[%c0_16, %c0_17, %c0_18] : memref<2x1x128xf32, #tpu.memory_space<vmem>>, vector<2x1x128xf32>
      %15 = vector.broadcast %14 : vector<2x1x128xf32> to vector<2x16x128xf32>
      %16 = arith.addf %13, %15 : vector<2x16x128xf32>
      %c0_19 = arith.constant 0 : index
      %c0_20 = arith.constant 0 : index
      %c0_21 = arith.constant 0 : index
      %17 = vector.load %arg6[%c0_19, %c0_20, %c0_21] : memref<2x16x128xf32, #tpu.memory_space<vmem>>, vector<2x16x128xf32>
      tpu.vector_store %arg6[%c0_19, %c0_20, %c0_21], %16 {strides = array<i32>} : memref<2x16x128xf32, #tpu.memory_space<vmem>>, vector<2x16x128xf32>,
    } else {
    }
    return
  }
  func.func @transform_0(%arg0: i32, %arg1: i32, %arg2: i32) -> (i32, i32, i32) {
    %c0_i32 = arith.constant 0 : i32
    %c0_i32_0 = arith.constant 0 : i32
    return %arg0, %c0_i32, %arg2 : i32, i32, i32
  }
  func.func @transform_1(%arg0: i32, %arg1: i32, %arg2: i32) -> (i32, i32, i32) {
    %c0_i32 = arith.constant 0 : i32
    return %arg0, %arg1, %arg2 : i32, i32, i32
  }
  func.func @transform_2(%arg0: i32, %arg1: i32, %arg2: i32) -> (i32, i32, i32) {
    %c0_i32 = arith.constant 0 : i32
    %c0_i32_0 = arith.constant 0 : i32
    return %arg0, %c0_i32, %arg1 : i32, i32, i32
  }
  func.func @transform_3(%arg0: i32, %arg1: i32, %arg2: i32) -> (i32, i32, i32) {
    %c0_i32 = arith.constant 0 : i32
    %c0_i32_0 = arith.constant 0 : i32
    return %arg0, %c0_i32, %arg1 : i32, i32, i32
  }
}

</mosaic_0001>

<llo_original>
// kernel: tpu_custom_call.1
$region0: #{tpu_custom_call.1}
  #allocation0 [shape = 'u32[]', space=smem, size = 0x4, offset = 0x4, fixed_abs, tag = 'smem constant byte address 0x4 - core index']
  #allocation1 [shape = 'u32[144,128]{1,0:T(1,128)}', space=vmem, size = 0x12000, scoped, tag = 'internal scratch']
  #allocation2 [shape = 'f32[2,16,128]{2,1,0:T(8,128)}', space=vmem, size = 0x4000, scoped, tag = 'scratch operand']
  #allocation10 [shape = 's32[]', space=sflag, size = 0x4, offset = 0, fixed_abs, tag = 'sflag constant byte address 0x0 - dummy sync flag']
  %s0 = inlined_call_operand.hbm [shape: f32[8,16,256], index: 0, kind: input, shape index: {}]
  %s1 = inlined_call_operand.hbm [shape: bf16[8,256,256], index: 1, kind: input, shape index: {}]
  %s2 = inlined_call_operand.hbm [shape: f32[8,1,256], index: 2, kind: input, shape index: {}]
  %s3 = inlined_call_operand.hbm [shape: f32[8,16,256], index: 3, kind: output, shape index: {}]
  %s4 = sld [smem:[#allocation0]]
  $region65: #{tpu_custom_call.1} parent=0
    _
  %s6 = ssub.s32 1, %s4
  %s7 = scalar_select 0, %s6, %s4
  $region1: #{tpu_custom_call.1} parent=0
    #allocation3 [shape = 'u8[32768]{0}', space=vmem, size = 0x8000, scoped, tag = 'input window, operand 0']
    #allocation4 [shape = 's32[2]{0}', space=sflag, size = 0x8, scoped, tag = 'scoped memory for tpu_custom_call.1']
    #allocation5 [shape = 's32[2]{0}', space=sflag, size = 0x8, scoped, tag = 'scoped memory for tpu_custom_call.1']
    #allocation6 [shape = 'u8[131072]{0}', space=vmem, size = 0x20000, scoped, tag = 'input window, operand 1']
    #allocation7 [shape = 's32[2]{0}', space=sflag, size = 0x8, scoped, tag = 'scoped memory for tpu_custom_call.1']
    #allocation8 [shape = 'u8[2048]{0}', space=vmem, size = 0x800, scoped, tag = 'input window, operand 2']
    #allocation9 [shape = 'u8[32768]{0}', space=vmem, size = 0x8000, scoped, tag = 'output window, operand 0']
    %8 = vsyncpa [#allocation4], 0
    %s9 = scalar_lea.sflag [#allocation4], 1
    %10 = vsyncpa %s9, 0
    %11 = vsyncpa [#allocation7], 0
    %s12 = scalar_lea.sflag [#allocation7], 1
    %13 = vsyncpa %s12, 0
    %14 = vsyncpa [#allocation5], 0
    %s15 = scalar_lea.sflag [#allocation5], 1
    %16 = vsyncpa %s15, 0
    loop: start=0, step=1, limit=18
    $region2: #{tpu_custom_call.1} parent=1 // loop_pre_header
      _
    $region3: #{tpu_custom_call.1} parent=1 // loop_header
      %s18 = sphi 0, %s22
      %p19 = scmp.ge.s32.totalorder %s18, 18
      %s25 = sphi 0, %s44
      %s26 = sphi 0, %s40
      %s27 = sphi 0, %s36
      %s28 = sphi 0, %s25
      %s29 = sphi 0, %s26
      %s30 = sphi 0, %s27
      %s31 = sphi 0, %s28
      %s32 = sphi 0, %s29
      %s33 = sphi 0, %s30
      %s49 = sphi 0, %s51
      %s52 = sphi 0, %s49
      %s53 = sphi 0, %s52
      %s69 = sphi 0, %s53
      %s79 = sphi 0, %s81
      %s82 = sphi 0, %s79
      %s83 = sphi 0, %s82
      %s99 = sphi 0, %s83
      %s107 = sphi 0, %s109
      %s110 = sphi 0, %s107
      %s111 = sphi 0, %s110
      %s127 = sphi 0, %s111
      %s135 = sphi 0, %s137
      %s138 = sphi 0, %s135
      %s139 = sphi 0, %s138
      %s155 = sphi 0, %s139
    $region4: #{tpu_custom_call.1} parent=1 // loop_header_branch
      %21 = sbr.rel (%p19) target = $region8
    $region5: #{tpu_custom_call.1} parent=1 // loop_body
      %s23 = ssub.s32 %s18, 1
      %s24 = ssub.s32 %s18, 2
      %s34 = sadd.s32 1, %s27
      %p35 = scmp.ge.s32.totalorder %s34, 2
      %s36 = scalar_select %p35, 0, %s34
      %s37 = sadd.s32 1, %s26
      %s38 = scalar_select %p35, %s37, %s26
      %p39 = scmp.ge.s32.totalorder %s38, 2
      %s40 = scalar_select %p39, 0, %s38
      %s41 = sadd.s32 1, %s25
      %s42 = scalar_select %p39, %s41, %s25
      %p43 = scmp.ge.s32.totalorder %s42, 4
      %s44 = scalar_select %p43, 0, %s42
      %s45 = ssub.s32 %s25, %s44
      %s46 = ssub.s32 %s27, %s36
      %s47 = sor.u32 %s45, %s46
      %p48 = scmp.eq.s32.totalorder %s47, 0
      %s50 = sadd.s32 %s49, 1
      %s51 = scalar_select %p48, %s49, %s50
      %p54 = pneg %p48
      %p55 = scmp.eq.s32.totalorder %s18, 15
      %p56 = por %p54, %p55
      %p57 = scmp.ne.s32.totalorder %s49, %s52
      %p58 = scmp.eq.s32.totalorder %s18, 0
      %p59 = por %p57, %p58
      %p60 = scmp.ne.s32.totalorder %s49, %s52
      %p61 = scmp.eq.s32.totalorder %s23, 15
      %p62 = por %p60, %p61
      %p63 = scmp.ne.s32.totalorder %s52, %s53
      %p64 = scmp.eq.s32.totalorder %s23, 0
      %p65 = por %p63, %p64
      %p66 = scmp.ne.s32.totalorder %s52, %s53
      %p67 = scmp.eq.s32.totalorder %s24, 15
      %p68 = por %p66, %p67
      %p70 = scmp.ne.s32.totalorder %s53, %s69
      %p71 = scmp.eq.s32.totalorder %s24, 0
      %p72 = por %p70, %p71
      %s73 = ssub.s32 %s25, %s44
      %s74 = ssub.s32 %s26, %s40
      %s75 = sor.u32 %s73, %s74
      %s76 = ssub.s32 %s27, %s36
      %s77 = sor.u32 %s75, %s76
      %p78 = scmp.eq.s32.totalorder %s77, 0
      %s80 = sadd.s32 %s79, 1
      %s81 = scalar_select %p78, %s79, %s80
      %p84 = pneg %p78
      %p85 = scmp.eq.s32.totalorder %s18, 15
      %p86 = por %p84, %p85
      %p87 = scmp.ne.s32.totalorder %s79, %s82
      %p88 = scmp.eq.s32.totalorder %s18, 0
      %p89 = por %p87, %p88
      %p90 = scmp.ne.s32.totalorder %s79, %s82
      %p91 = scmp.eq.s32.totalorder %s23, 15
      %p92 = por %p90, %p91
      %p93 = scmp.ne.s32.totalorder %s82, %s83
      %p94 = scmp.eq.s32.totalorder %s23, 0
      %p95 = por %p93, %p94
      %p96 = scmp.ne.s32.totalorder %s82, %s83
      %p97 = scmp.eq.s32.totalorder %s24, 15
      %p98 = por %p96, %p97
      %p100 = scmp.ne.s32.totalorder %s83, %s99
      %p101 = scmp.eq.s32.totalorder %s24, 0
      %p102 = por %p100, %p101
      %s103 = ssub.s32 %s25, %s44
      %s104 = ssub.s32 %s26, %s40
      %s105 = sor.u32 %s103, %s104
      %p106 = scmp.eq.s32.totalorder %s105, 0
      %s108 = sadd.s32 %s107, 1
      %s109 = scalar_select %p106, %s107, %s108
      %p112 = pneg %p106
      %p113 = scmp.eq.s32.totalorder %s18, 15
      %p114 = por %p112, %p113
      %p115 = scmp.ne.s32.totalorder %s107, %s110
      %p116 = scmp.eq.s32.totalorder %s18, 0
      %p117 = por %p115, %p116
      %p118 = scmp.ne.s32.totalorder %s107, %s110
      %p119 = scmp.eq.s32.totalorder %s23, 15
      %p120 = por %p118, %p119
      %p121 = scmp.ne.s32.totalorder %s110, %s111
      %p122 = scmp.eq.s32.totalorder %s23, 0
      %p123 = por %p121, %p122
      %p124 = scmp.ne.s32.totalorder %s110, %s111
      %p125 = scmp.eq.s32.totalorder %s24, 15
      %p126 = por %p124, %p125
      %p128 = scmp.ne.s32.totalorder %s111, %s127
      %p129 = scmp.eq.s32.totalorder %s24, 0
      %p130 = por %p128, %p129
      %s131 = ssub.s32 %s25, %s44
      %s132 = ssub.s32 %s26, %s40
      %s133 = sor.u32 %s131, %s132
      %p134 = scmp.eq.s32.totalorder %s133, 0
      %s136 = sadd.s32 %s135, 1
      %s137 = scalar_select %p134, %s135, %s136
      %p140 = pneg %p134
      %p141 = scmp.eq.s32.totalorder %s18, 15
      %p142 = por %p140, %p141
      %p143 = scmp.ne.s32.totalorder %s135, %s138
      %p144 = scmp.eq.s32.totalorder %s18, 0
      %p145 = por %p143, %p144
      %p146 = scmp.ne.s32.totalorder %s135, %s138
      %p147 = scmp.eq.s32.totalorder %s23, 15
      %p148 = por %p146, %p147
      %p149 = scmp.ne.s32.totalorder %s138, %s139
      %p150 = scmp.eq.s32.totalorder %s23, 0
      %p151 = por %p149, %p150
      %p152 = scmp.ne.s32.totalorder %s138, %s139
      %p153 = scmp.eq.s32.totalorder %s24, 15
      %p154 = por %p152, %p153
      %p156 = scmp.ne.s32.totalorder %s139, %s155
      %p157 = scmp.eq.s32.totalorder %s24, 0
      %p158 = por %p156, %p157
      %p159 = scmp.le.s32.totalorder 1, %s18
      %p160 = scmp.lt.s32.totalorder %s18, 17
      %p161 = pnand %p159, %p160
      %p162 = pneg %p161
      // Predicated region
      $region9: #{tpu_custom_call.1} parent=5 // pred_check
        _
      $region10: #{tpu_custom_call.1} parent=5 // pred_check_branch
        %164 = sbr.rel (%p161) target = $region12
      $region11: #{tpu_custom_call.1} parent=5 // pred_region
        %s165 = ssub.s32 %s18, 1
      $region12: #{tpu_custom_call.1} parent=5 // pred_fallthru
        _
      %p166 = scmp.lt.s32.totalorder %s18, 16
      // Predicated region
      $region13: #{tpu_custom_call.1} parent=5 // pred_check
        %p167 = pneg %p166
      $region14: #{tpu_custom_call.1} parent=5 // pred_check_branch
        %169 = sbr.rel (%p167) target = $region16
      $region15: #{tpu_custom_call.1} parent=5 // pred_region
        // Predicated region
        $region17: #{tpu_custom_call.1} parent=15 // pred_check
          %p170 = pneg %p59
        $region18: #{tpu_custom_call.1} parent=15 // pred_check_branch
          %172 = sbr.rel (%p170) target = $region20
        $region19: #{tpu_custom_call.1} parent=15 // pred_region
          %s173 = sand.u32 %s49, 1
          %s174 = scalar_lea.sflag [#allocation4], %s173
          %s175 = sand.u32 %s49, 1
          %s176 = smul.addr %s175, 32
          %s177 = scalar_lea.vmem [#allocation3], %s176
          %s178 = smul.u32 2, %s25
          %s180 = ssub.s32 512, 512
          %181 = vsyncadd %s174, %s180
          %s182 = smul.addr %s178, 4
          %s183 = sadd.s32 %s27, %s182
          %s184 = smul.addr %s183, 128
          %s185 = scalar_lea.hbm %s0, %s184
          %s186 = sshll.u32 %s177, 4
          %s187 = int_to_ptr.vmem [resolvable:$true] %s186
          %192 = dma.hbm_to_vmem [thread:$0]  %s185, 512, %s187, %s174, 256, 128, 8
        $region20: #{tpu_custom_call.1} parent=15 // pred_fallthru
          _
        // Predicated region
        $region21: #{tpu_custom_call.1} parent=15 // pred_check
          %p193 = pneg %p89
        $region22: #{tpu_custom_call.1} parent=15 // pred_check_branch
          %195 = sbr.rel (%p193) target = $region24
        $region23: #{tpu_custom_call.1} parent=15 // pred_region
          #allocation11 [shape = 'u32[6]{0}', space=smem, size = 0x18, scoped, tag = 'DMA stride descriptor']
          %s196 = sand.u32 %s18, 1
          %s197 = scalar_lea.sflag [#allocation7], %s196
          %s198 = sand.u32 %s79, 1
          %s199 = smul.addr %s198, 128
          %s200 = scalar_lea.vmem [#allocation6], %s199
          %s201 = smul.u32 2, %s25
          %s202 = smul.u32 16, %s26
          %s204 = ssub.s32 2048, 2048
          %205 = vsyncadd %s197, %s204
          %s206 = smul.addr %s202, 2
          %s207 = sadd.s32 %s27, %s206
          %s208 = smul.addr %s201, 64
          %s209 = sadd.s32 %s207, %s208
          %s210 = smul.addr %s209, 64
          %s211 = scalar_lea.hbm %s1, %s210
          %s213 = sshll.u32 1, 14
          %s214 = sxor.u32 4294967295, %s213
          %s216 = sld [smem:[#allocation0]]
          %s217 = sadd.s32 2, %s216
          %s219 = sshll.u32 7, 26
          %s220 = sxor.u32 4294967295, %s219
          %s221 = sand.u32 0, %s220
          %s222 = sshll.u32 %s217, 26
          %s223 = sor.u32 %s221, %s222
          %s224 = sshll.u32 %s200, 4
          %s225 = int_to_ptr.vmem [resolvable:$true] %s224
          %231 = sst [smem:[#allocation11]] 4096
          %s232 = scalar_lea.smem [#allocation11], 1
          %233 = sst [smem:[%s232]] 1024
          %s234 = scalar_lea.smem [#allocation11], 2
          %235 = sst [smem:[%s234]] 16
          %s236 = scalar_lea.smem [#allocation11], 3
          %237 = sst [smem:[%s236]] 128
          %s238 = scalar_lea.smem [#allocation11], 4
          %239 = sst [smem:[%s238]] 64
          %s240 = scalar_lea.smem [#allocation11], 5
          %241 = sst [smem:[%s240]] 4
          %243 = dma.general %s211, 2048, %s225, %s197, [#allocation10], [#allocation11], %s223, 0
        $region24: #{tpu_custom_call.1} parent=15 // pred_fallthru
          _
        // Predicated region
        $region25: #{tpu_custom_call.1} parent=15 // pred_check
          %p244 = pneg %p117
        $region26: #{tpu_custom_call.1} parent=15 // pred_check_branch
          %246 = sbr.rel (%p244) target = $region28
        $region27: #{tpu_custom_call.1} parent=15 // pred_region
          %s247 = sand.u32 %s18, 1
          %s248 = scalar_lea.sflag [#allocation7], %s247
          %s249 = sand.u32 %s107, 1
          %s250 = smul.addr %s249, 2
          %s251 = scalar_lea.vmem [#allocation8], %s250
          %s252 = smul.u32 2, %s25
          %s254 = ssub.s32 32, 32
          %255 = vsyncadd %s248, %s254
          %s256 = smul.addr %s252, 2
          %s257 = sadd.s32 %s26, %s256
          %s258 = smul.addr %s257, 16
          %s259 = scalar_lea.hbm %s2, %s258
          %s260 = sshll.u32 %s251, 4
          %s261 = int_to_ptr.vmem [resolvable:$true] %s260
          %266 = dma.hbm_to_vmem [thread:$0]  %s259, 32, %s261, %s248, 32, 16, 1
        $region28: #{tpu_custom_call.1} parent=15 // pred_fallthru
          _
      $region16: #{tpu_custom_call.1} parent=5 // pred_fallthru
        _
      %p267 = scmp.le.s32.totalorder 1, %s18
      %p268 = scmp.lt.s32.totalorder %s18, 17
      %p269 = pnand %p267, %p268
      %p270 = pneg %p269
      // Predicated region
      $region29: #{tpu_custom_call.1} parent=5 // pred_check
        _
      $region30: #{tpu_custom_call.1} parent=5 // pred_check_branch
        %272 = sbr.rel (%p269) target = $region32
      $region31: #{tpu_custom_call.1} parent=5 // pred_region
        %s273 = ssub.s32 %s18, 1
        %s274 = sand.u32 %s52, 1
        %s275 = scalar_lea.sflag [#allocation4], %s274
        %s276 = sand.u32 %s52, 1
        %s277 = smul.addr %s276, 32
        %s278 = scalar_lea.vmem [#allocation3], %s277
        // Predicated region
        $region33: #{tpu_custom_call.1} parent=31 // pred_check
          %p279 = pneg %p65
        $region34: #{tpu_custom_call.1} parent=31 // pred_check_branch
          %281 = sbr.rel (%p279) target = $region36
        $region35: #{tpu_custom_call.1} parent=31 // pred_region
          %282 = dma.done %s275, 512
        $region36: #{tpu_custom_call.1} parent=31 // pred_fallthru
          _
        %s283 = sand.u32 %s23, 1
        %s284 = scalar_lea.sflag [#allocation7], %s283
        %s285 = sand.u32 %s82, 1
        %s286 = smul.addr %s285, 128
        %s287 = scalar_lea.vmem [#allocation6], %s286
        // Predicated region
        $region37: #{tpu_custom_call.1} parent=31 // pred_check
          %p288 = pneg %p95
        $region38: #{tpu_custom_call.1} parent=31 // pred_check_branch
          %290 = sbr.rel (%p288) target = $region40
        $region39: #{tpu_custom_call.1} parent=31 // pred_region
          %291 = dma.done %s284, 2048
        $region40: #{tpu_custom_call.1} parent=31 // pred_fallthru
          _
        %s292 = sand.u32 %s23, 1
        %s293 = scalar_lea.sflag [#allocation7], %s292
        %s294 = sand.u32 %s110, 1
        %s295 = smul.addr %s294, 2
        %s296 = scalar_lea.vmem [#allocation8], %s295
        // Predicated region
        $region41: #{tpu_custom_call.1} parent=31 // pred_check
          %p297 = pneg %p123
        $region42: #{tpu_custom_call.1} parent=31 // pred_check_branch
          %299 = sbr.rel (%p297) target = $region44
        $region43: #{tpu_custom_call.1} parent=31 // pred_region
          %300 = dma.done %s293, 32
        $region44: #{tpu_custom_call.1} parent=31 // pred_fallthru
          _
        %s301 = sand.u32 %s52, 1
        %s302 = scalar_lea.sflag [#allocation4], %s301
        %s303 = sand.u32 %s52, 1
        %s304 = smul.addr %s303, 32
        %s305 = scalar_lea.vmem [#allocation3], %s304
        %p306 = pneg %p65
        %p307 = pneg %p62
        %s308 = sand.u32 %s23, 1
        %s309 = scalar_lea.sflag [#allocation7], %s308
        %s310 = sand.u32 %s82, 1
        %s311 = smul.addr %s310, 128
        %s312 = scalar_lea.vmem [#allocation6], %s311
        %p313 = pneg %p95
        %p314 = pneg %p92
        %s315 = sand.u32 %s23, 1
        %s316 = scalar_lea.sflag [#allocation7], %s315
        %s317 = sand.u32 %s110, 1
        %s318 = smul.addr %s317, 2
        %s319 = scalar_lea.vmem [#allocation8], %s318
        %p320 = pneg %p123
        %p321 = pneg %p120
        %p322 = pneg %p151
        %p323 = pneg %p148
        %s324 = sand.u32 %s138, 1
        %s325 = scalar_lea.sflag [#allocation5], %s324
        %s326 = sand.u32 %s138, 1
        %s327 = smul.addr %s326, 32
        %s328 = scalar_lea.vmem [#allocation9], %s327
        %s329 = smul.u32 2, %s28
        %s330 = smul.u32 2, %s28
        %s331 = smul.u32 16, %s29
        %s332 = smul.u32 2, %s28
        %s333 = smul.u32 2, %s28
        %p335 = scmp.eq.s32.totalorder %s30, 0
        // Predicated region
        $region45: #{tpu_custom_call.1} parent=31 // pred_check
          %p336 = pneg %p335
        $region46: #{tpu_custom_call.1} parent=31 // pred_check_branch
          %338 = sbr.rel (%p336) target = $region48
        $region47: #{tpu_custom_call.1} parent=31 // pred_region
          %339 = vst [vmem:[#allocation2] sm:$0xff] 0.0
          %340 = vst [vmem:[#allocation2 + $0x8] sm:$0xff] 0.0
          %341 = vst [vmem:[#allocation2 + $0x10] sm:$0xff] 0.0
          %342 = vst [vmem:[#allocation2 + $0x18] sm:$0xff] 0.0
        $region48: #{tpu_custom_call.1} parent=31 // pred_fallthru
          _
        %v343 = vld [vmem:[%s278] sm:$0xff]
        %v344 = vld [vmem:[%s278 + $0x8] sm:$0xff]
        %v345 = vld [vmem:[%s278 + $0x10] sm:$0xff]
        %v346 = vld [vmem:[%s278 + $0x18] sm:$0xff]
        %v347 = vpack.c.bf16 %v344, %v343
        %v348 = vpack.c.bf16 %v346, %v345
        %v349 = vld [vmem:[#allocation2] sm:$0xff]
        %v350 = vld [vmem:[#allocation2 + $0x8] sm:$0xff]
        %v351 = vld [vmem:[#allocation2 + $0x10] sm:$0xff]
        %v352 = vld [vmem:[#allocation2 + $0x18] sm:$0xff]
        %v353 = vld [vmem:[%s287] sm:$0xf]
        %v354 = vld [vmem:[%s287 + $0x4] sm:$0xf]
        %v355 = vld [vmem:[%s287 + $0x8] sm:$0xf]
        %v356 = vld [vmem:[%s287 + $0xc] sm:$0xf]
        %v357 = vld [vmem:[%s287 + $0x10] sm:$0xf]
        %v358 = vld [vmem:[%s287 + $0x14] sm:$0xf]
        %v359 = vld [vmem:[%s287 + $0x18] sm:$0xf]
        %v360 = vld [vmem:[%s287 + $0x1c] sm:$0xf]
        %v361 = vld [vmem:[%s287 + $0x20] sm:$0xf]
        %v362 = vld [vmem:[%s287 + $0x24] sm:$0xf]
        %v363 = vld [vmem:[%s287 + $0x28] sm:$0xf]
        %v364 = vld [vmem:[%s287 + $0x2c] sm:$0xf]
        %v365 = vld [vmem:[%s287 + $0x30] sm:$0xf]
        %v366 = vld [vmem:[%s287 + $0x34] sm:$0xf]
        %v367 = vld [vmem:[%s287 + $0x38] sm:$0xf]
        %v368 = vld [vmem:[%s287 + $0x3c] sm:$0xf]
        %v369 = vld [vmem:[%s287 + $0x40] sm:$0xf]
        %v370 = vld [vmem:[%s287 + $0x44] sm:$0xf]
        %v371 = vld [vmem:[%s287 + $0x48] sm:$0xf]
        %v372 = vld [vmem:[%s287 + $0x4c] sm:$0xf]
        %v373 = vld [vmem:[%s287 + $0x50] sm:$0xf]
        %v374 = vld [vmem:[%s287 + $0x54] sm:$0xf]
        %v375 = vld [vmem:[%s287 + $0x58] sm:$0xf]
        %v376 = vld [vmem:[%s287 + $0x5c] sm:$0xf]
        %v377 = vld [vmem:[%s287 + $0x60] sm:$0xf]
        %v378 = vld [vmem:[%s287 + $0x64] sm:$0xf]
        %v379 = vld [vmem:[%s287 + $0x68] sm:$0xf]
        %v380 = vld [vmem:[%s287 + $0x6c] sm:$0xf]
        %v381 = vld [vmem:[%s287 + $0x70] sm:$0xf]
        %v382 = vld [vmem:[%s287 + $0x74] sm:$0xf]
        %v383 = vld [vmem:[%s287 + $0x78] sm:$0xf]
        %v384 = vld [vmem:[%s287 + $0x7c] sm:$0xf]
        %v401 = vunpack.c.l.b16 %v353
        %v402 = vunpack.c.l.b16 %v354
        %v403 = vunpack.c.l.b16 %v355
        %v404 = vunpack.c.l.b16 %v356
        %v405 = vunpack.c.l.b16 %v357
        %v406 = vunpack.c.l.b16 %v358
        %v407 = vunpack.c.l.b16 %v359
        %v408 = vunpack.c.l.b16 %v360
        %v409 = vunpack.c.l.b16 %v361
        %v410 = vunpack.c.l.b16 %v362
        %v411 = vunpack.c.l.b16 %v363
        %v412 = vunpack.c.l.b16 %v364
        %v413 = vunpack.c.l.b16 %v365
        %v414 = vunpack.c.l.b16 %v366
        %v415 = vunpack.c.l.b16 %v367
        %v416 = vunpack.c.l.b16 %v368
        %v417 = vpack.c.b16 %v402, %v401
        %v418 = vpack.c.b16 %v404, %v403
        %v419 = vpack.c.b16 %v406, %v405
        %v420 = vpack.c.b16 %v408, %v407
        %v421 = vpack.c.b16 %v410, %v409
        %v422 = vpack.c.b16 %v412, %v411
        %v423 = vpack.c.b16 %v414, %v413
        %v424 = vpack.c.b16 %v416, %v415
        %433 = vmatprep.subr.bf16.mxu0 0
        %434 = vmatpush1.bf16.xpose.msra.mxu0 %v417
        %435 = vmatprep.subr.bf16.mxu0 0
        %436 = vmatpush1.bf16.xpose.msra.mxu0 %v418
        %437 = vmatprep.subr.bf16.mxu0 0
        %438 = vmatpush1.bf16.xpose.msra.mxu0 %v419
        %439 = vmatprep.subr.bf16.mxu0 0
        %440 = vmatpush1.bf16.xpose.msra.mxu0 %v420
        %441 = vmatprep.subr.bf16.mxu0 0
        %442 = vmatpush1.bf16.xpose.msra.mxu0 %v421
        %443 = vmatprep.subr.bf16.mxu0 0
        %444 = vmatpush1.bf16.xpose.msra.mxu0 %v422
        %445 = vmatprep.subr.bf16.mxu0 0
        %446 = vmatpush1.bf16.xpose.msra.mxu0 %v423
        %447 = vmatprep.subr.bf16.mxu0 0
        %448 = vmatpush1.bf16.xpose.msra.mxu0 %v424
        %449 = vmatprep.subr.bf16.mxu0 0
        %450 = vmatpush1.bf16.xpose.msra.mxu0 0
        %451 = vmatprep.subr.bf16.mxu0 0
        %452 = vmatpush1.bf16.xpose.msra.mxu0 0
        %453 = vmatprep.subr.bf16.mxu0 0
        %454 = vmatpush1.bf16.xpose.msra.mxu0 0
        %455 = vmatprep.subr.bf16.mxu0 0
        %456 = vmatpush1.bf16.xpose.msra.mxu0 0
        %457 = vmatprep.subr.bf16.mxu0 0
        %458 = vmatpush1.bf16.xpose.msra.mxu0 0
        %459 = vmatprep.subr.bf16.mxu0 0
        %460 = vmatpush1.bf16.xpose.msra.mxu0 0
        %461 = vmatprep.subr.bf16.mxu0 0
        %462 = vmatpush1.bf16.xpose.msra.mxu0 0
        %463 = vmatprep.subr.bf16.mxu0 0
        %464 = vmatpush1.bf16.xpose.msra.mxu0 0
        %465 = vmatprep.mubr.bf16.mxu0 0
        %466 = vmatmul.mubr.bf16.gmra.mrb[0].mxu0 %v347
        %v467 = vpop.f32.mrb[0].mxu0
        %v468 = vadd.f32 0.0, %v467
        %v469 = vpop.f32.mrb[0].mxu0
        %v470 = vpop.f32.mrb[0].mxu0
        %v471 = vadd.f32 0.0, %v470
        %v472 = vpop.f32.mrb[0].mxu0
        %473 = vdwg.mxu0
        %v490 = vunpack.c.l.b16 %v369
        %v491 = vunpack.c.l.b16 %v370
        %v492 = vunpack.c.l.b16 %v371
        %v493 = vunpack.c.l.b16 %v372
        %v494 = vunpack.c.l.b16 %v373
        %v495 = vunpack.c.l.b16 %v374
        %v496 = vunpack.c.l.b16 %v375
        %v497 = vunpack.c.l.b16 %v376
        %v498 = vunpack.c.l.b16 %v377
        %v499 = vunpack.c.l.b16 %v378
        %v500 = vunpack.c.l.b16 %v379
        %v501 = vunpack.c.l.b16 %v380
        %v502 = vunpack.c.l.b16 %v381
        %v503 = vunpack.c.l.b16 %v382
        %v504 = vunpack.c.l.b16 %v383
        %v505 = vunpack.c.l.b16 %v384
        %v506 = vpack.c.b16 %v491, %v490
        %v507 = vpack.c.b16 %v493, %v492
        %v508 = vpack.c.b16 %v495, %v494
        %v509 = vpack.c.b16 %v497, %v496
        %v510 = vpack.c.b16 %v499, %v498
        %v511 = vpack.c.b16 %v501, %v500
        %v512 = vpack.c.b16 %v503, %v502
        %v513 = vpack.c.b16 %v505, %v504
        %522 = vmatprep.subr.bf16.mxu0 0
        %523 = vmatpush1.bf16.xpose.msra.mxu0 %v506
        %524 = vmatprep.subr.bf16.mxu0 0
        %525 = vmatpush1.bf16.xpose.msra.mxu0 %v507
        %526 = vmatprep.subr.bf16.mxu0 0
        %527 = vmatpush1.bf16.xpose.msra.mxu0 %v508
        %528 = vmatprep.subr.bf16.mxu0 0
        %529 = vmatpush1.bf16.xpose.msra.mxu0 %v509
        %530 = vmatprep.subr.bf16.mxu0 0
        %531 = vmatpush1.bf16.xpose.msra.mxu0 %v510
        %532 = vmatprep.subr.bf16.mxu0 0
        %533 = vmatpush1.bf16.xpose.msra.mxu0 %v511
        %534 = vmatprep.subr.bf16.mxu0 0
        %535 = vmatpush1.bf16.xpose.msra.mxu0 %v512
        %536 = vmatprep.subr.bf16.mxu0 0
        %537 = vmatpush1.bf16.xpose.msra.mxu0 %v513
        %538 = vmatprep.subr.bf16.mxu0 0
        %539 = vmatpush1.bf16.xpose.msra.mxu0 0
        %540 = vmatprep.subr.bf16.mxu0 0
        %541 = vmatpush1.bf16.xpose.msra.mxu0 0
        %542 = vmatprep.subr.bf16.mxu0 0
        %543 = vmatpush1.bf16.xpose.msra.mxu0 0
        %544 = vmatprep.subr.bf16.mxu0 0
        %545 = vmatpush1.bf16.xpose.msra.mxu0 0
        %546 = vmatprep.subr.bf16.mxu0 0
        %547 = vmatpush1.bf16.xpose.msra.mxu0 0
        %548 = vmatprep.subr.bf16.mxu0 0
        %549 = vmatpush1.bf16.xpose.msra.mxu0 0
        %550 = vmatprep.subr.bf16.mxu0 0
        %551 = vmatpush1.bf16.xpose.msra.mxu0 0
        %552 = vmatprep.subr.bf16.mxu0 0
        %553 = vmatpush1.bf16.xpose.msra.mxu0 0
        %554 = vmatprep.mubr.bf16.mxu0 0
        %555 = vmatmul.mubr.bf16.gmra.mrb[0].mxu0 %v348
        %v556 = vpop.f32.mrb[0].mxu0
        %v557 = vadd.f32 0.0, %v556
        %v558 = vpop.f32.mrb[0].mxu0
        %v559 = vpop.f32.mrb[0].mxu0
        %v560 = vadd.f32 0.0, %v559
        %v561 = vpop.f32.mrb[0].mxu0
        %562 = vdwg.mxu0
        %v563 = vadd.f32 %v349, %v468
        %v564 = vadd.f32 %v350, %v471
        %v565 = vadd.f32 %v351, %v557
        %v566 = vadd.f32 %v352, %v560
        %567 = vst [vmem:[#allocation2] sm:$0xff] %v563
        %568 = vst [vmem:[#allocation2 + $0x8] sm:$0xff] %v564
        %569 = vst [vmem:[#allocation2 + $0x10] sm:$0xff] %v565
        %570 = vst [vmem:[#allocation2 + $0x18] sm:$0xff] %v566
        %p571 = scmp.eq.s32.totalorder %s30, 1
        // Predicated region
        $region49: #{tpu_custom_call.1} parent=31 // pred_check
          %p572 = pneg %p571
        $region50: #{tpu_custom_call.1} parent=31 // pred_check_branch
          %574 = sbr.rel (%p572) target = $region52
        $region51: #{tpu_custom_call.1} parent=31 // pred_region
          %v575 = vld [vmem:[#allocation2] sm:$0xff]
          %v576 = vld [vmem:[#allocation2 + $0x8] sm:$0xff]
          %v577 = vld [vmem:[#allocation2 + $0x10] sm:$0xff]
          %v578 = vld [vmem:[#allocation2 + $0x18] sm:$0xff]
          %v579 = vld [vmem:[%s296] sm:$0x1]
          %v580 = vld [vmem:[%s296 + $0x1] sm:$0x1]
          %v583 = vlaneseq
          %v584 = vshrl.u32 %v583, 7
          %v585 = vsub.s32 0, %v584
          %v586 = vrot.slane %v579, %v585
          %v587 = vlaneseq
          %v588 = vshrl.u32 %v587, 7
          %v589 = vsub.s32 0, %v588
          %v590 = vrot.slane %v580, %v589
          %v593 = vadd.f32 %v575, %v586
          %v594 = vadd.f32 %v576, %v586
          %v595 = vadd.f32 %v577, %v590
          %v596 = vadd.f32 %v578, %v590
          %597 = vst [vmem:[%s328] sm:$0xff] %v593
          %598 = vst [vmem:[%s328 + $0x8] sm:$0xff] %v594
          %599 = vst [vmem:[%s328 + $0x10] sm:$0xff] %v595
          %600 = vst [vmem:[%s328 + $0x18] sm:$0xff] %v596
        $region52: #{tpu_custom_call.1} parent=31 // pred_fallthru
          _
        %s601 = sand.u32 %s138, 1
        %s602 = scalar_lea.sflag [#allocation5], %s601
        %s603 = sand.u32 %s138, 1
        %s604 = smul.addr %s603, 32
        %s605 = scalar_lea.vmem [#allocation9], %s604
        // Predicated region
        $region53: #{tpu_custom_call.1} parent=31 // pred_check
          %p606 = pneg %p148
        $region54: #{tpu_custom_call.1} parent=31 // pred_check_branch
          %608 = sbr.rel (%p606) target = $region56
        $region55: #{tpu_custom_call.1} parent=31 // pred_region
          %s609 = smul.u32 2, %s28
          %s611 = ssub.s32 512, 512
          %612 = vsyncadd %s602, %s611
          %s613 = smul.addr %s609, 4
          %s614 = sadd.s32 %s29, %s613
          %s615 = smul.addr %s614, 128
          %s616 = scalar_lea.hbm %s3, %s615
          %s617 = sshll.u32 %s605, 4
          %s618 = int_to_ptr.vmem [resolvable:$true] %s617
          %623 = dma.vmem_to_hbm [thread:$0]  %s618, 512, %s616, %s602, 128, 256, 8
        $region56: #{tpu_custom_call.1} parent=31 // pred_fallthru
          _
      $region32: #{tpu_custom_call.1} parent=5 // pred_fallthru
        _
      %p624 = scmp.le.s32.totalorder 2, %s18
      // Predicated region
      $region57: #{tpu_custom_call.1} parent=5 // pred_check
        %p625 = pneg %p624
      $region58: #{tpu_custom_call.1} parent=5 // pred_check_branch
        %627 = sbr.rel (%p625) target = $region60
      $region59: #{tpu_custom_call.1} parent=5 // pred_region
        %s628 = ssub.s32 %s18, 2
        // Predicated region
        $region61: #{tpu_custom_call.1} parent=59 // pred_check
          %p629 = pneg %p154
        $region62: #{tpu_custom_call.1} parent=59 // pred_check_branch
          %631 = sbr.rel (%p629) target = $region64
        $region63: #{tpu_custom_call.1} parent=59 // pred_region
          %s632 = sand.u32 %s139, 1
          %s633 = scalar_lea.sflag [#allocation5], %s632
          %s634 = sand.u32 %s139, 1
          %s635 = smul.addr %s634, 32
          %s636 = scalar_lea.vmem [#allocation9], %s635
          %637 = dma.done %s633, 512
        $region64: #{tpu_custom_call.1} parent=59 // pred_fallthru
          _
      $region60: #{tpu_custom_call.1} parent=5 // pred_fallthru
        _
    $region6: #{tpu_custom_call.1} parent=1 // loop_footer
      %s22 = sadd.s32 1, %s18
    $region7: #{tpu_custom_call.1} parent=1 // loop_footer_branch
      %17 = sbr.rel target = $region3
    $region8: #{tpu_custom_call.1} parent=1 // loop_exit
      _
    %638 = vsyncpa [#allocation4], 1
    %s639 = scalar_lea.sflag [#allocation4], 1
    %640 = vsyncpa %s639, 1
    %641 = vsyncpa [#allocation7], 1
    %s642 = scalar_lea.sflag [#allocation7], 1
    %643 = vsyncpa %s642, 1
    %644 = vsyncpa [#allocation5], 1
    %s645 = scalar_lea.sflag [#allocation5], 1
    %646 = vsyncpa %s645, 1

</llo_original>
